<compile_context>
chip_gen: v7x
topology: tpu7x:2x2x1
jax: 0.10.0
libtpu: 0.0.40
codegen_flags: <defaults>
</compile_context>

<pallas_src>
import functools

import jax
import jax.numpy as jnp
from jax.experimental import pallas as pl
from jax.experimental.pallas import tpu as pltpu

EPS = 1e-6


def _modulated_mlp_kernel(x_ref, c_ref, wk_ref, wc_ref, wv_ref, o_ref):
    """One batch tile: x (TB, D), c (TB, C), wk (D, M), wc (C, M), wv (M, D) -> o (TB, D)."""
    x = x_ref[...]
    xf = x.astype(jnp.float32)

    # RMSNorm (no affine): x / sqrt(mean(x^2, -1) + eps). Statistics in f32.
    ms = jnp.mean(xf * xf, axis=-1, keepdims=True)
    xn = xf * jax.lax.rsqrt(ms + EPS)

    # Two small MXU passes; accumulate in f32. Operands keep the weight dtype so bf16
    # inputs use the native bf16 MXU path.
    scores = jnp.dot(xn.astype(wk_ref.dtype), wk_ref[...],
                     preferred_element_type=jnp.float32)           # (TB, M)
    mod = jnp.dot(c_ref[...], wc_ref[...],
                  preferred_element_type=jnp.float32)              # (TB, M)

    # Gate + SiLU over only the M useful lanes, in f32 (VALU + one EUP sigmoid pass).
    gated = scores * (1.0 + mod)
    act = gated * jax.nn.sigmoid(gated)

    # Residual: out = x + act @ wv.
    out = xf + jnp.dot(act.astype(wv_ref.dtype), wv_ref[...],
                       preferred_element_type=jnp.float32)
    o_ref[...] = out.astype(o_ref.dtype)


@functools.partial(jax.jit, static_argnames=("block_b",))
def modulated_mlp(x, c, wk, wc, wv, *, block_b: int = 8192):
    """ModulatedMLP forward. x: (B, D), c: (B, C), wk: (D, M), wc: (C, M), wv: (M, D)."""
    B, D = x.shape
    Bc, C = c.shape
    M = wk.shape[1]
    assert Bc == B and wk.shape == (D, M) and wc.shape == (C, M) and wv.shape == (M, D)
    assert block_b % 8 == 0

    # Batch tile: either the full batch (full-extent block, any size), or a
    # multiple-of-8 tile. The last tile may be ragged; all math is row-local and the
    # out-of-bounds writeback is masked by Pallas, so undefined padded rows are harmless.
    tb = B if B <= block_b else block_b
    grid = (pl.cdiv(B, tb),)

    itemsize = jnp.dtype(x.dtype).itemsize
    w_itemsize = jnp.dtype(wk.dtype).itemsize
    cost = pl.CostEstimate(
        flops=2 * B * (D * M + C * M + M * D),
        transcendentals=B * M,                                   # sigmoid
        bytes_accessed=(2 * B * D + B * C) * itemsize
        + (D * M + C * M + M * D) * w_itemsize,
    )

    return pl.pallas_call(
        _modulated_mlp_kernel,
        out_shape=jax.ShapeDtypeStruct((B, D), x.dtype),
        grid_spec=pltpu.PrefetchScalarGridSpec(
            num_scalar_prefetch=0,
            grid=grid,
            in_specs=[
                pl.BlockSpec((tb, D), lambda i: (i, 0)),   # x: streamed per batch tile
                pl.BlockSpec((tb, C), lambda i: (i, 0)),   # c: streamed per batch tile
                pl.BlockSpec((D, M), lambda i: (0, 0)),    # wk: VMEM-resident
                pl.BlockSpec((C, M), lambda i: (0, 0)),    # wc: VMEM-resident
                pl.BlockSpec((M, D), lambda i: (0, 0)),    # wv: VMEM-resident
            ],
            out_specs=pl.BlockSpec((tb, D), lambda i: (i, 0)),
        ),
        compiler_params=pltpu.CompilerParams(
            # Independent batch tiles -> shard grid steps across TensorCores (v7x megacore).
            dimension_semantics=("parallel",),
        ),
        cost_estimate=cost,
    )(x, c, wk, wc, wv)


def modulated_mlp_ref(x, c, wk, wc, wv):
    xf = x.astype(jnp.float32)
    cf = c.astype(jnp.float32)
    xn = xf * jax.lax.rsqrt(jnp.mean(xf * xf, axis=-1, keepdims=True) + EPS)
    scores = xn @ wk.astype(jnp.float32)
    gated = scores * (1.0 + cf @ wc.astype(jnp.float32))
    act = gated * jax.nn.sigmoid(gated)
    return (xf + act @ wv.astype(jnp.float32)).astype(x.dtype)


if __name__ == "__main__":
    B, DIM, MLP_DIM, COND_DIM = 8, 32, 64, 16

    key = jax.random.PRNGKey(0)
    kx, kc, kwk, kwc, kwv = jax.random.split(key, 5)

    x = jax.random.normal(kx, (B, DIM), dtype=jnp.float32)
    c = jax.random.normal(kc, (B, COND_DIM), dtype=jnp.float32)
    wk = jax.random.normal(kwk, (DIM, MLP_DIM), dtype=jnp.float32) / jnp.sqrt(DIM)
    wc = jax.random.normal(kwc, (COND_DIM, MLP_DIM), dtype=jnp.float32) / jnp.sqrt(COND_DIM)
    wv = jnp.zeros((MLP_DIM, DIM), dtype=jnp.float32)   # zero_init=True in the module

    # 1) zero-initialized wv: output must equal x (to f32 accuracy).
    out = jax.block_until_ready(modulated_mlp(x, c, wk, wc, wv))
    ref = modulated_mlp_ref(x, c, wk, wc, wv)
    assert out.shape == (B, DIM)
    assert jnp.allclose(out, ref, atol=1e-5, rtol=1e-5), "mismatch vs reference (zero wv)"

    # 2) non-zero wv exercises the full path.
    wv_nz = jax.random.normal(kwv, (MLP_DIM, DIM), dtype=jnp.float32) / jnp.sqrt(MLP_DIM)
    out2 = jax.block_until_ready(modulated_mlp(x, c, wk, wc, wv_nz))
    ref2 = modulated_mlp_ref(x, c, wk, wc, wv_nz)
    assert jnp.allclose(out2, ref2, atol=1e-4, rtol=1e-4), "mismatch vs reference (nonzero wv)"

    # 3) larger, non-divisible batch exercises the pipelined multi-step grid + ragged tail tile.
    B2 = 300
    kx2, kc2 = jax.random.split(jax.random.PRNGKey(1))
    x2 = jax.random.normal(kx2, (B2, DIM), dtype=jnp.float32)
    c2 = jax.random.normal(kc2, (B2, COND_DIM), dtype=jnp.float32)
    out3 = jax.block_until_ready(modulated_mlp(x2, c2, wk, wc, wv_nz, block_b=128))
    ref3 = modulated_mlp_ref(x2, c2, wk, wc, wv_nz)
    assert jnp.allclose(out3, ref3, atol=1e-4, rtol=1e-4), "mismatch vs reference (large batch)"

    # 4) bf16 operands take the native bf16 MXU path (no forced f32 upcast of matmul operands).
    xb, cb = x2.astype(jnp.bfloat16), c2.astype(jnp.bfloat16)
    wkb, wcb, wvb = wk.astype(jnp.bfloat16), wc.astype(jnp.bfloat16), wv_nz.astype(jnp.bfloat16)
    out4 = jax.block_until_ready(modulated_mlp(xb, cb, wkb, wcb, wvb, block_b=128))
    ref4 = modulated_mlp_ref(xb, cb, wkb, wcb, wvb)
    assert out4.dtype == jnp.bfloat16
    assert jnp.allclose(out4.astype(jnp.float32), ref4.astype(jnp.float32),
                        atol=1e-1, rtol=1e-1), "mismatch vs reference (bf16)"

    print("KERNEL_OK")
</pallas_src>

<mosaic_0001>
module attributes {stable_mosaic.version = 11 : i64} {
  func.func @_modulated_mlp_kernel(%arg0: i32, %arg1: memref<8x32xf32, #tpu.memory_space<vmem>>, %arg2: memref<8x16xf32, #tpu.memory_space<vmem>>, %arg3: memref<32x64xf32, #tpu.memory_space<vmem>>, %arg4: memref<16x64xf32, #tpu.memory_space<vmem>>, %arg5: memref<64x32xf32, #tpu.memory_space<vmem>>, %arg6: memref<8x32xf32, #tpu.memory_space<vmem>>) attributes {dimension_semantics = [#tpu.dimension_semantics<parallel>], iteration_bounds = array<i64: 1>, scalar_prefetch = 0 : i64, scratch_operands = 0 : i64, tpu.core_type = #tpu.core_type<tc>, window_params = [{transform_indices = @transform_0, window_bounds = array<i64: 8, 32>}, {transform_indices = @transform_1, window_bounds = array<i64: 8, 16>}, {pipeline_mode = #tpu.pipeline_mode<synchronous>, transform_indices = @transform_2, window_bounds = array<i64: 32, 64>}, {pipeline_mode = #tpu.pipeline_mode<synchronous>, transform_indices = @transform_3, window_bounds = array<i64: 16, 64>}, {pipeline_mode = #tpu.pipeline_mode<synchronous>, transform_indices = @transform_4, window_bounds = array<i64: 64, 32>}, {transform_indices = @transform_5, window_bounds = array<i64: 8, 32>}]} {
    %c0 = arith.constant 0 : index
    %c0_0 = arith.constant 0 : index
    %0 = vector.load %arg1[%c0, %c0_0] : memref<8x32xf32, #tpu.memory_space<vmem>>, vector<8x32xf32>
    %1 = arith.mulf %0, %0 : vector<8x32xf32>
    %cst = arith.constant dense<0.000000e+00> : vector<8xf32>
    %2 = vector.multi_reduction <add>, %1, %cst [1] : vector<8x32xf32> to vector<8xf32>
    %3 = vector.shape_cast %2 : vector<8xf32> to vector<8x1xf32>
    %cst_1 = arith.constant 3.200000e+01 : f32
    %4 = vector.broadcast %cst_1 : f32 to vector<8x1xf32>
    %5 = arith.divf %3, %4 : vector<8x1xf32>
    %cst_2 = arith.constant 9.99999997E-7 : f32
    %6 = vector.broadcast %cst_2 : f32 to vector<8x1xf32>
    %7 = arith.addf %5, %6 : vector<8x1xf32>
    %8 = math.rsqrt %7 : vector<8x1xf32>
    %9 = vector.broadcast %8 : vector<8x1xf32> to vector<8x32xf32>
    %10 = arith.mulf %0, %9 : vector<8x32xf32>
    %c0_3 = arith.constant 0 : index
    %c0_4 = arith.constant 0 : index
    %11 = vector.load %arg3[%c0_3, %c0_4] : memref<32x64xf32, #tpu.memory_space<vmem>>, vector<32x64xf32>
    %cst_5 = arith.constant dense<0.000000e+00> : vector<8x64xf32>
    %12 = tpu.matmul %10, %11, %cst_5 {dimension_numbers = #tpu.dot_dimension_numbers<[1], [0], [0], [1], [0, 0, 1, 1], [], []>} : vector<8x32xf32>, vector<32x64xf32>, vector<8x64xf32> -> vector<8x64xf32>
    %c0_6 = arith.constant 0 : index
    %c0_7 = arith.constant 0 : index
    %13 = vector.load %arg2[%c0_6, %c0_7] : memref<8x16xf32, #tpu.memory_space<vmem>>, vector<8x16xf32>
    %c0_8 = arith.constant 0 : index
    %c0_9 = arith.constant 0 : index
    %14 = vector.load %arg4[%c0_8, %c0_9] : memref<16x64xf32, #tpu.memory_space<vmem>>, vector<16x64xf32>
    %cst_10 = arith.constant dense<0.000000e+00> : vector<8x64xf32>
    %15 = tpu.matmul %13, %14, %cst_10 {dimension_numbers = #tpu.dot_dimension_numbers<[1], [0], [0], [1], [0, 0, 1, 1], [], []>} : vector<8x16xf32>, vector<16x64xf32>, vector<8x64xf32> -> vector<8x64xf32>
    %cst_11 = arith.constant 1.000000e+00 : f32
    %16 = vector.broadcast %cst_11 : f32 to vector<8x64xf32>
    %17 = arith.addf %16, %15 : vector<8x64xf32>
    %18 = arith.mulf %12, %17 : vector<8x64xf32>
    %19 = arith.negf %18 : vector<8x64xf32>
    %20 = math.exp %19 : vector<8x64xf32>
    %cst_12 = arith.constant 1.000000e+00 : f32
    %21 = vector.broadcast %cst_12 : f32 to vector<8x64xf32>
    %22 = arith.addf %21, %20 : vector<8x64xf32>
    %23 = arith.divf %21, %22 : vector<8x64xf32>
    %24 = arith.mulf %18, %23 : vector<8x64xf32>
    %c0_13 = arith.constant 0 : index
    %c0_14 = arith.constant 0 : index
    %25 = vector.load %arg5[%c0_13, %c0_14] : memref<64x32xf32, #tpu.memory_space<vmem>>, vector<64x32xf32>
    %cst_15 = arith.constant dense<0.000000e+00> : vector<8x32xf32>
    %26 = tpu.matmul %24, %25, %cst_15 {dimension_numbers = #tpu.dot_dimension_numbers<[1], [0], [0], [1], [0, 0, 1, 1], [], []>} : vector<8x64xf32>, vector<64x32xf32>, vector<8x32xf32> -> vector<8x32xf32>
    %27 = arith.addf %0, %26 : vector<8x32xf32>
    %c0_16 = arith.constant 0 : index
    %c0_17 = arith.constant 0 : index
    %28 = vector.load %arg6[%c0_16, %c0_17] : memref<8x32xf32, #tpu.memory_space<vmem>>, vector<8x32xf32>
    tpu.vector_store %arg6[%c0_16, %c0_17], %27 {strides = array<i32>} : memref<8x32xf32, #tpu.memory_space<vmem>>, vector<8x32xf32>,
    return
  }
  func.func @transform_0(%arg0: i32) -> (i32, i32) {
    %c0_i32 = arith.constant 0 : i32
    %c0_i32_0 = arith.constant 0 : i32
    return %arg0, %c0_i32 : i32, i32
  }
  func.func @transform_1(%arg0: i32) -> (i32, i32) {
    %c0_i32 = arith.constant 0 : i32
    %c0_i32_0 = arith.constant 0 : i32
    return %arg0, %c0_i32 : i32, i32
  }
  func.func @transform_2(%arg0: i32) -> (i32, i32) {
    %c0_i32 = arith.constant 0 : i32
    %c0_i32_0 = arith.constant 0 : i32
    %c0_i32_1 = arith.constant 0 : i32
    return %c0_i32, %c0_i32_0 : i32, i32
  }
  func.func @transform_3(%arg0: i32) -> (i32, i32) {
    %c0_i32 = arith.constant 0 : i32
    %c0_i32_0 = arith.constant 0 : i32
    %c0_i32_1 = arith.constant 0 : i32
    return %c0_i32, %c0_i32_0 : i32, i32
  }
  func.func @transform_4(%arg0: i32) -> (i32, i32) {
    %c0_i32 = arith.constant 0 : i32
    %c0_i32_0 = arith.constant 0 : i32
    %c0_i32_1 = arith.constant 0 : i32
    return %c0_i32, %c0_i32_0 : i32, i32
  }
  func.func @transform_5(%arg0: i32) -> (i32, i32) {
    %c0_i32 = arith.constant 0 : i32
    %c0_i32_0 = arith.constant 0 : i32
    return %arg0, %c0_i32 : i32, i32
  }
}

</mosaic_0001>

<llo_original>
// kernel: modulated_mlp.1
$region0: #{modulated_mlp.1}
  #allocation0 [shape = 'u32[]', space=smem, size = 0x4, offset = 0x4, fixed_abs, tag = 'smem constant byte address 0x4 - core index']
  #allocation1 [shape = 'u32[144,128]{1,0:T(1,128)}', space=vmem, size = 0x12000, scoped, tag = 'internal scratch']
  %s0 = inlined_call_operand.vmem [shape: f32[8,32], index: 0, kind: input, shape index: {}]
  %s1 = inlined_call_operand.vmem [shape: f32[8,16], index: 1, kind: input, shape index: {}]
  %s2 = inlined_call_operand.vmem [shape: f32[32,64], index: 2, kind: input, shape index: {}]
  %s3 = inlined_call_operand.vmem [shape: f32[16,64], index: 3, kind: input, shape index: {}]
  %s4 = inlined_call_operand.vmem [shape: f32[64,32], index: 4, kind: input, shape index: {}]
  %s5 = inlined_call_operand.hbm [shape: f32[8,32], index: 5, kind: output, shape index: {}]
  %s6 = sld [smem:[#allocation0]]
  $region30: #{modulated_mlp.1} parent=0
    _
  %s8 = ssub.s32 1, %s6
  %s9 = scalar_select 0, %s8, %s6
  $region1: #{modulated_mlp.1} parent=0
    #allocation2 [shape = 'u8[4096]{0}', space=vmem, size = 0x1000, scoped, tag = 'output window, operand 0, single buffered']
    #allocation3 [shape = 's32[1]{0}', space=sflag, size = 0x4, scoped, tag = 'scoped memory for modulated_mlp.1']
    %10 = vsyncpa [#allocation3], 0
    // Predicated region
    $region2: #{modulated_mlp.1} parent=1 // pred_check
      _
    $region3: #{modulated_mlp.1} parent=1 // pred_check_branch
      %12 = sbr.rel (0) target = $region5
    $region4: #{modulated_mlp.1} parent=1 // pred_region
      _
    $region5: #{modulated_mlp.1} parent=1 // pred_fallthru
      _
    // Predicated region
    $region6: #{modulated_mlp.1} parent=1 // pred_check
      _
    $region7: #{modulated_mlp.1} parent=1 // pred_check_branch
      %14 = sbr.rel (0) target = $region9
    $region8: #{modulated_mlp.1} parent=1 // pred_region
      _
    $region9: #{modulated_mlp.1} parent=1 // pred_fallthru
      _
    // Predicated region
    $region10: #{modulated_mlp.1} parent=1 // pred_check
      _
    $region11: #{modulated_mlp.1} parent=1 // pred_check_branch
      %16 = sbr.rel (0) target = $region13
    $region12: #{modulated_mlp.1} parent=1 // pred_region
      _
    $region13: #{modulated_mlp.1} parent=1 // pred_fallthru
      _
    // Predicated region
    $region14: #{modulated_mlp.1} parent=1 // pred_check
      _
    $region15: #{modulated_mlp.1} parent=1 // pred_check_branch
      %18 = sbr.rel (0) target = $region17
    $region16: #{modulated_mlp.1} parent=1 // pred_region
      _
    $region17: #{modulated_mlp.1} parent=1 // pred_fallthru
      _
    // Predicated region
    $region18: #{modulated_mlp.1} parent=1 // pred_check
      _
    $region19: #{modulated_mlp.1} parent=1 // pred_check_branch
      %20 = sbr.rel (0) target = $region21
    $region20: #{modulated_mlp.1} parent=1 // pred_region
      _
    $region21: #{modulated_mlp.1} parent=1 // pred_fallthru
      _
    %v21 = vld [vmem:[%s0] sm:$0xff]
    %v22 = vmul.f32 %v21, %v21
    %vm23 = vcmask 261120
    %v24 = vsel %vm23, %v22, 0.0
    %25 = vadd.xlane.f32.xlu0 %v24
    %v26 = vpop.xlane.xlu0 %25
    %v27 = vrcp.pop 32.0
    %v28 = vmul.f32 %v26, %v27
    %v29 = vadd.f32 %v28, 1e-06
    %v30 = vrsqrt.pop %v29
    %v31 = vmul.f32 %v21, %v30
    %v32 = vld [vmem:[%s2] sm:$0xff]
    %v33 = vld [vmem:[%s2 + $0x8] sm:$0xff]
    %v34 = vld [vmem:[%s2 + $0x10] sm:$0xff]
    %v35 = vld [vmem:[%s2 + $0x18] sm:$0xff]
    %v37 = vsel %vm23, %v31, 0
    %39 = vmatprep.subr.mxu0 0.0
    %40 = vmatpush1.msra.mxu0 %v32
    %41 = vmatprep.subr.mxu0 0.0
    %42 = vmatpush1.msra.mxu0 %v33
    %43 = vmatprep.subr.mxu0 0.0
    %44 = vmatpush1.msra.mxu0 %v34
    %45 = vmatprep.subr.mxu0 0.0
    %46 = vmatpush1.msra.mxu0 %v35
    %47 = vmatprep.subr.mxu0 0.0
    %48 = vmatpush1.msra.mxu0 0.0
    %49 = vmatprep.subr.mxu0 0.0
    %50 = vmatpush1.msra.mxu0 0.0
    %51 = vmatprep.subr.mxu0 0.0
    %52 = vmatpush1.msra.mxu0 0.0
    %53 = vmatprep.subr.mxu0 0.0
    %54 = vmatpush1.msra.mxu0 0.0
    %55 = vmatprep.subr.mxu0 0.0
    %56 = vmatpush1.msra.mxu0 0.0
    %57 = vmatprep.subr.mxu0 0.0
    %58 = vmatpush1.msra.mxu0 0.0
    %59 = vmatprep.subr.mxu0 0.0
    %60 = vmatpush1.msra.mxu0 0.0
    %61 = vmatprep.subr.mxu0 0.0
    %62 = vmatpush1.msra.mxu0 0.0
    %63 = vmatprep.subr.mxu0 0.0
    %64 = vmatpush1.msra.mxu0 0.0
    %65 = vmatprep.subr.mxu0 0.0
    %66 = vmatpush1.msra.mxu0 0.0
    %67 = vmatprep.subr.mxu0 0.0
    %68 = vmatpush1.msra.mxu0 0.0
    %69 = vmatprep.subr.mxu0 0.0
    %70 = vmatpush1.msra.mxu0 0.0
    %71 = vmatprep.subr.mxu0 0.0
    %72 = vmatpush1.msra.mxu0 0.0
    %73 = vmatprep.subr.mxu0 0.0
    %74 = vmatpush1.msra.mxu0 0.0
    %75 = vmatprep.subr.mxu0 0.0
    %76 = vmatpush1.msra.mxu0 0.0
    %77 = vmatprep.subr.mxu0 0.0
    %78 = vmatpush1.msra.mxu0 0.0
    %79 = vmatprep.subr.mxu0 0.0
    %80 = vmatpush1.msra.mxu0 0.0
    %81 = vmatprep.subr.mxu0 0.0
    %82 = vmatpush1.msra.mxu0 0.0
    %83 = vmatprep.subr.mxu0 0.0
    %84 = vmatpush1.msra.mxu0 0.0
    %85 = vmatprep.subr.mxu0 0.0
    %86 = vmatpush1.msra.mxu0 0.0
    %87 = vmatprep.subr.mxu0 0.0
    %88 = vmatpush1.msra.mxu0 0.0
    %89 = vmatprep.subr.mxu0 0.0
    %90 = vmatpush1.msra.mxu0 0.0
    %91 = vmatprep.subr.mxu0 0.0
    %92 = vmatpush1.msra.mxu0 0.0
    %93 = vmatprep.subr.mxu0 0.0
    %94 = vmatpush1.msra.mxu0 0.0
    %95 = vmatprep.subr.mxu0 0.0
    %96 = vmatpush1.msra.mxu0 0.0
    %97 = vmatprep.subr.mxu0 0.0
    %98 = vmatpush1.msra.mxu0 0.0
    %99 = vmatprep.subr.mxu0 0.0
    %100 = vmatpush1.msra.mxu0 0.0
    %101 = vmatprep.subr.mxu0 0.0
    %102 = vmatpush1.msra.mxu0 0.0
    %103 = vmatprep.mubr.f32.mxu0 0.0
    %104 = vmatmul.mubr.f32.gmra.mrb[0].mxu0 %v37
    %v105 = vpop.f32.mrb[0].mxu0
    %v106 = vadd.f32 0.0, %v105
    %v107 = vpop.f32.mrb[0].mxu0
    %108 = vdwg.mxu0
    %v109 = vld [vmem:[%s1] sm:$0xff]
    %v110 = vld [vmem:[%s3] sm:$0xff]
    %v111 = vld [vmem:[%s3 + $0x8] sm:$0xff]
    %vm112 = vcmask 130048
    %v114 = vsel %vm112, %v109, 0
    %116 = vmatprep.subr.mxu0 0.0
    %117 = vmatpush1.msra.mxu0 %v110
    %118 = vmatprep.subr.mxu0 0.0
    %119 = vmatpush1.msra.mxu0 %v111
    %120 = vmatprep.subr.mxu0 0.0
    %121 = vmatpush1.msra.mxu0 0.0
    %122 = vmatprep.subr.mxu0 0.0
    %123 = vmatpush1.msra.mxu0 0.0
    %124 = vmatprep.subr.mxu0 0.0
    %125 = vmatpush1.msra.mxu0 0.0
    %126 = vmatprep.subr.mxu0 0.0
    %127 = vmatpush1.msra.mxu0 0.0
    %128 = vmatprep.subr.mxu0 0.0
    %129 = vmatpush1.msra.mxu0 0.0
    %130 = vmatprep.subr.mxu0 0.0
    %131 = vmatpush1.msra.mxu0 0.0
    %132 = vmatprep.subr.mxu0 0.0
    %133 = vmatpush1.msra.mxu0 0.0
    %134 = vmatprep.subr.mxu0 0.0
    %135 = vmatpush1.msra.mxu0 0.0
    %136 = vmatprep.subr.mxu0 0.0
    %137 = vmatpush1.msra.mxu0 0.0
    %138 = vmatprep.subr.mxu0 0.0
    %139 = vmatpush1.msra.mxu0 0.0
    %140 = vmatprep.subr.mxu0 0.0
    %141 = vmatpush1.msra.mxu0 0.0
    %142 = vmatprep.subr.mxu0 0.0
    %143 = vmatpush1.msra.mxu0 0.0
    %144 = vmatprep.subr.mxu0 0.0
    %145 = vmatpush1.msra.mxu0 0.0
    %146 = vmatprep.subr.mxu0 0.0
    %147 = vmatpush1.msra.mxu0 0.0
    %148 = vmatprep.subr.mxu0 0.0
    %149 = vmatpush1.msra.mxu0 0.0
    %150 = vmatprep.subr.mxu0 0.0
    %151 = vmatpush1.msra.mxu0 0.0
    %152 = vmatprep.subr.mxu0 0.0
    %153 = vmatpush1.msra.mxu0 0.0
    %154 = vmatprep.subr.mxu0 0.0
    %155 = vmatpush1.msra.mxu0 0.0
    %156 = vmatprep.subr.mxu0 0.0
    %157 = vmatpush1.msra.mxu0 0.0
    %158 = vmatprep.subr.mxu0 0.0
    %159 = vmatpush1.msra.mxu0 0.0
    %160 = vmatprep.subr.mxu0 0.0
    %161 = vmatpush1.msra.mxu0 0.0
    %162 = vmatprep.subr.mxu0 0.0
    %163 = vmatpush1.msra.mxu0 0.0
    %164 = vmatprep.subr.mxu0 0.0
    %165 = vmatpush1.msra.mxu0 0.0
    %166 = vmatprep.subr.mxu0 0.0
    %167 = vmatpush1.msra.mxu0 0.0
    %168 = vmatprep.subr.mxu0 0.0
    %169 = vmatpush1.msra.mxu0 0.0
    %170 = vmatprep.subr.mxu0 0.0
    %171 = vmatpush1.msra.mxu0 0.0
    %172 = vmatprep.subr.mxu0 0.0
    %173 = vmatpush1.msra.mxu0 0.0
    %174 = vmatprep.subr.mxu0 0.0
    %175 = vmatpush1.msra.mxu0 0.0
    %176 = vmatprep.subr.mxu0 0.0
    %177 = vmatpush1.msra.mxu0 0.0
    %178 = vmatprep.subr.mxu0 0.0
    %179 = vmatpush1.msra.mxu0 0.0
    %180 = vmatprep.mubr.f32.mxu0 0.0
    %181 = vmatmul.mubr.f32.gmra.mrb[0].mxu0 %v114
    %v182 = vpop.f32.mrb[0].mxu0
    %v183 = vadd.f32 1.0, %v182
    %v184 = vpop.f32.mrb[0].mxu0
    %185 = vdwg.mxu0
    %v186 = vmul.f32 %v106, %v183
    %v187 = vxor.u32 %v186, 2147483648
    %v188 = vmul.f32 %v187, 1.442695
    %v189 = vpow.pop %v188
    %v190 = vadd.f32 %v189, 1.0
    %v191 = vrcp.pop %v190
    %v192 = vmul.f32 1.0, %v191
    %v193 = vmul.f32 %v186, %v192
    %v194 = vld [vmem:[%s4] sm:$0xff]
    %v195 = vld [vmem:[%s4 + $0x8] sm:$0xff]
    %v196 = vld [vmem:[%s4 + $0x10] sm:$0xff]
    %v197 = vld [vmem:[%s4 + $0x18] sm:$0xff]
    %v198 = vld [vmem:[%s4 + $0x20] sm:$0xff]
    %v199 = vld [vmem:[%s4 + $0x28] sm:$0xff]
    %v200 = vld [vmem:[%s4 + $0x30] sm:$0xff]
    %v201 = vld [vmem:[%s4 + $0x38] sm:$0xff]
    %vm202 = vcmask 523264
    %v204 = vsel %vm202, %v193, 0
    %206 = vmatprep.subr.mxu0 0.0
    %207 = vmatpush1.msra.mxu0 %v194
    %208 = vmatprep.subr.mxu0 0.0
    %209 = vmatpush1.msra.mxu0 %v195
    %210 = vmatprep.subr.mxu0 0.0
    %211 = vmatpush1.msra.mxu0 %v196
    %212 = vmatprep.subr.mxu0 0.0
    %213 = vmatpush1.msra.mxu0 %v197
    %214 = vmatprep.subr.mxu0 0.0
    %215 = vmatpush1.msra.mxu0 %v198
    %216 = vmatprep.subr.mxu0 0.0
    %217 = vmatpush1.msra.mxu0 %v199
    %218 = vmatprep.subr.mxu0 0.0
    %219 = vmatpush1.msra.mxu0 %v200
    %220 = vmatprep.subr.mxu0 0.0
    %221 = vmatpush1.msra.mxu0 %v201
    %222 = vmatprep.subr.mxu0 0.0
    %223 = vmatpush1.msra.mxu0 0.0
    %224 = vmatprep.subr.mxu0 0.0
    %225 = vmatpush1.msra.mxu0 0.0
    %226 = vmatprep.subr.mxu0 0.0
    %227 = vmatpush1.msra.mxu0 0.0
    %228 = vmatprep.subr.mxu0 0.0
    %229 = vmatpush1.msra.mxu0 0.0
    %230 = vmatprep.subr.mxu0 0.0
    %231 = vmatpush1.msra.mxu0 0.0
    %232 = vmatprep.subr.mxu0 0.0
    %233 = vmatpush1.msra.mxu0 0.0
    %234 = vmatprep.subr.mxu0 0.0
    %235 = vmatpush1.msra.mxu0 0.0
    %236 = vmatprep.subr.mxu0 0.0
    %237 = vmatpush1.msra.mxu0 0.0
    %238 = vmatprep.subr.mxu0 0.0
    %239 = vmatpush1.msra.mxu0 0.0
    %240 = vmatprep.subr.mxu0 0.0
    %241 = vmatpush1.msra.mxu0 0.0
    %242 = vmatprep.subr.mxu0 0.0
    %243 = vmatpush1.msra.mxu0 0.0
    %244 = vmatprep.subr.mxu0 0.0
    %245 = vmatpush1.msra.mxu0 0.0
    %246 = vmatprep.subr.mxu0 0.0
    %247 = vmatpush1.msra.mxu0 0.0
    %248 = vmatprep.subr.mxu0 0.0
    %249 = vmatpush1.msra.mxu0 0.0
    %250 = vmatprep.subr.mxu0 0.0
    %251 = vmatpush1.msra.mxu0 0.0
    %252 = vmatprep.subr.mxu0 0.0
    %253 = vmatpush1.msra.mxu0 0.0
    %254 = vmatprep.subr.mxu0 0.0
    %255 = vmatpush1.msra.mxu0 0.0
    %256 = vmatprep.subr.mxu0 0.0
    %257 = vmatpush1.msra.mxu0 0.0
    %258 = vmatprep.subr.mxu0 0.0
    %259 = vmatpush1.msra.mxu0 0.0
    %260 = vmatprep.subr.mxu0 0.0
    %261 = vmatpush1.msra.mxu0 0.0
    %262 = vmatprep.subr.mxu0 0.0
    %263 = vmatpush1.msra.mxu0 0.0
    %264 = vmatprep.subr.mxu0 0.0
    %265 = vmatpush1.msra.mxu0 0.0
    %266 = vmatprep.subr.mxu0 0.0
    %267 = vmatpush1.msra.mxu0 0.0
    %268 = vmatprep.subr.mxu0 0.0
    %269 = vmatpush1.msra.mxu0 0.0
    %270 = vmatprep.mubr.f32.mxu0 0.0
    %271 = vmatmul.mubr.f32.gmra.mrb[0].mxu0 %v204
    %v272 = vpop.f32.mrb[0].mxu0
    %v273 = vadd.f32 0.0, %v272
    %v274 = vpop.f32.mrb[0].mxu0
    %275 = vdwg.mxu0
    %v276 = vadd.f32 %v21, %v273
    %277 = vst.msk [vmem:[#allocation2] sm:$0xff] %vm23, %v276
    // Predicated region
    $region22: #{modulated_mlp.1} parent=1 // pred_check
      _
    $region23: #{modulated_mlp.1} parent=1 // pred_check_branch
      %279 = sbr.rel (0) target = $region25
    $region24: #{modulated_mlp.1} parent=1 // pred_region
      %s281 = ssub.s32 128, 128
      %282 = vsyncadd [#allocation3], %s281
      %s284 = sshll.u32 [#allocation2], 4
      %s285 = int_to_ptr.vmem [resolvable:$true] %s284
      %287 = dma.vmem_to_hbm [thread:$0]  %s285, 128, %s5, [#allocation3]
    $region25: #{modulated_mlp.1} parent=1 // pred_fallthru
      _
    // Predicated region
    $region26: #{modulated_mlp.1} parent=1 // pred_check
      _
    $region27: #{modulated_mlp.1} parent=1 // pred_check_branch
      %289 = sbr.rel (0) target = $region29
    $region28: #{modulated_mlp.1} parent=1 // pred_region
      %290 = dma.done [#allocation3], 128
    $region29: #{modulated_mlp.1} parent=1 // pred_fallthru
      _
    %291 = vsyncpa [#allocation3], 1

</llo_original>
